<compile_context>
chip_gen: v6e
topology: v6e:2x2x1
jax: 0.10.0
libtpu: 0.0.40
codegen_flags: <defaults>
</compile_context>

<pallas_src>
import functools

import jax
import jax.numpy as jnp
from jax.experimental import pallas as pl
from jax.experimental.pallas import tpu as pltpu


def _round_up(v, m):
    return (v + m - 1) // m * m


# -----------------------------------------------------------------------------
# Shared chunked epilogue: bias add, reparameterize, per-row KL partial.
# -----------------------------------------------------------------------------
def _epilogue_chunks(acc_read, b_ref, eps_ref, z_ref, kl_ref, *, hp, tn, tb):
    """Process the fused (mean | logvar) accumulator in 128-lane-aligned chunks.

    acc_read(lo) must return the f32 accumulator slab acc[:, lo:lo+tn]
    (a value slice in the single-step kernel, a scratch-ref load in the
    K-tiled kernel).  Offsets are compile-time constants (fully unrolled),
    so every slice is a static, lane-aligned view.
    """
    nchunks = hp // tn
    kl_acc = jnp.zeros((tb, 128), jnp.float32)
    for c in range(nchunks):                       # static, fully unrolled
        lo = c * tn
        mean = acc_read(lo) + b_ref[:, lo:lo + tn]
        logvar = acc_read(hp + lo) + b_ref[:, hp + lo:hp + lo + tn]

        # One EUP transcendental per element; std*std == exp(logvar).
        std = jnp.exp(0.5 * logvar)
        z_ref[:, lo:lo + tn] = (
            mean + eps_ref[:, lo:lo + tn] * std).astype(z_ref.dtype)

        term = 1.0 + logvar - mean * mean - std * std
        # Fold TN lanes into the 128-wide running partial with pure VPU adds
        # (static 128-lane slices pick whole vregs; no relayout, no XLU yet).
        for s in range(tn // 128):
            kl_acc = kl_acc + term[:, s * 128:(s + 1) * 128]
    kl_ref[...] = kl_acc                           # lane-dense (TB, 128) store


# -----------------------------------------------------------------------------
# Kernel variant 1: resident weight, single MXU pass per batch tile.
# Grid = (batch tiles,).  No accumulator scratch needed.
# -----------------------------------------------------------------------------
def _vs_kernel_resident(x_ref, w_ref, b_ref, eps_ref, z_ref, kl_ref, *, hp, tn):
    tb = x_ref.shape[0]
    acc = jnp.dot(x_ref[...], w_ref[...], preferred_element_type=jnp.float32)
    _epilogue_chunks(lambda lo: acc[:, lo:lo + tn],
                     b_ref, eps_ref, z_ref, kl_ref, hp=hp, tn=tn, tb=tb)


# -----------------------------------------------------------------------------
# Kernel variant 2: K-tiled contraction with f32 VMEM accumulator scratch.
# Grid = (batch tiles, K tiles); K is the last ("arbitrary") axis.
# -----------------------------------------------------------------------------
def _vs_kernel_ktiled(x_ref, w_ref, b_ref, eps_ref, z_ref, kl_ref, acc_ref,
                      *, hp, tn):
    k = pl.program_id(1)

    @pl.when(k == 0)
    def _init():
        acc_ref[...] = jnp.zeros_like(acc_ref)

    acc_ref[...] += jnp.dot(x_ref[...], w_ref[...],
                            preferred_element_type=jnp.float32)

    @pl.when(k == pl.num_programs(1) - 1)
    def _finalize():
        tb = acc_ref.shape[0]
        _epilogue_chunks(lambda lo: acc_ref[:, lo:lo + tn],
                         b_ref, eps_ref, z_ref, kl_ref, hp=hp, tn=tn, tb=tb)


# -----------------------------------------------------------------------------
# One-time parameter preparation (hoisted out of the per-call path).
# -----------------------------------------------------------------------------
def fuse_params(wm, bm, wv, bv, *, mxu_dtype=jnp.bfloat16):
    """Fuse + pad the two Linear layers into one (Hp, 2*Hp) MXU-ready weight.

    wm, wv: (H, H) weights already transposed to (in, out); bm, bv: (H,) biases.
    Returns (w_fused[bf16], b_fused[f32 (1, 2*Hp)]).  Call once per model.
    """
    H = wm.shape[0]
    Hp = max(_round_up(H, 128), 128)
    w = jnp.zeros((Hp, 2 * Hp), jnp.float32)
    w = w.at[:H, :H].set(wm.astype(jnp.float32))
    w = w.at[:H, Hp:Hp + H].set(wv.astype(jnp.float32))
    b = jnp.zeros((1, 2 * Hp), jnp.float32)
    b = b.at[0, :H].set(bm.astype(jnp.float32))
    b = b.at[0, Hp:Hp + H].set(bv.astype(jnp.float32))
    return w.astype(mxu_dtype), b


# -----------------------------------------------------------------------------
# Forward pass wrapper.
# -----------------------------------------------------------------------------
def variational_sampler(x, w_fused, b_fused, eps):
    """Forward pass of Variational_Sampler.

    x       : (B, H) activations
    w_fused : (Hp, 2*Hp) fused [Wm | Wv], bf16 (from fuse_params)
    b_fused : (1, 2*Hp)  fused [bm | bv], f32  (from fuse_params)
    eps     : (B, H) standard-normal noise

    Returns (z, loss) with z: (B, H) in x.dtype, loss: f32 scalar.
    """
    B, H = x.shape
    Hp = w_fused.shape[1] // 2
    assert w_fused.shape == (Hp, 2 * Hp)
    mxu_dtype = w_fused.dtype
    f32 = jnp.float32

    # Batch tiling: split in two when possible so the "parallel" axis has
    # extent >= 2 (both v7x TensorCores busy); cap at 128 rows per tile.
    TB = min(128, _round_up(max((B + 1) // 2, 8), 8))
    Bp = _round_up(B, TB)

    # Epilogue chunk width (128-lane multiple dividing Hp).
    TN = 512 if Hp % 512 == 0 else (256 if Hp % 256 == 0 else 128)

    # ---- pad / cast activations (skip copies when already aligned) --------
    if (Bp, Hp) == (B, H):
        x_p = x.astype(mxu_dtype)
        eps_p = eps.astype(f32)
    else:
        x_p = jnp.zeros((Bp, Hp), mxu_dtype).at[:B, :H].set(x.astype(mxu_dtype))
        eps_p = jnp.zeros((Bp, Hp), f32).at[:B, :H].set(eps.astype(f32))

    w_itemsize = jnp.dtype(mxu_dtype).itemsize
    w_bytes = Hp * 2 * Hp * w_itemsize
    # v7x-safe residency budget (includes Pallas' x2 input buffering).
    resident = 2 * w_bytes <= (16 << 20)

    if resident:
        TK = Hp
        grid = (Bp // TB,)
        kernel = functools.partial(_vs_kernel_resident, hp=Hp, tn=TN)
        in_specs = [
            pl.BlockSpec((TB, Hp), lambda i: (i, 0)),          # x tile
            pl.BlockSpec((Hp, 2 * Hp), lambda i: (0, 0)),      # resident weight
            pl.BlockSpec((1, 2 * Hp), lambda i: (0, 0)),       # fused bias
            pl.BlockSpec((TB, Hp), lambda i: (i, 0)),          # eps tile
        ]
        out_specs = (
            pl.BlockSpec((TB, Hp), lambda i: (i, 0)),          # z
            pl.BlockSpec((TB, 128), lambda i: (i, 0)),         # KL partials
        )
        scratch = []
        dims = ("parallel",)
    else:
        # Largest K tile whose double-buffered weight block stays <= 16 MiB.
        tk_budget = (16 << 20) // max(2 * 2 * Hp * w_itemsize, 1)
        TK = 128
        for cand in (1024, 512, 256):
            if Hp % cand == 0 and cand <= tk_budget:
                TK = cand
                break
        grid = (Bp // TB, Hp // TK)
        kernel = functools.partial(_vs_kernel_ktiled, hp=Hp, tn=TN)
        in_specs = [
            pl.BlockSpec((TB, TK), lambda i, k: (i, k)),       # x tile
            pl.BlockSpec((TK, 2 * Hp), lambda i, k: (k, 0)),   # weight K-slice
            pl.BlockSpec((1, 2 * Hp), lambda i, k: (0, 0)),    # fused bias
            pl.BlockSpec((TB, Hp), lambda i, k: (i, 0)),       # eps tile
        ]
        out_specs = (
            pl.BlockSpec((TB, Hp), lambda i, k: (i, 0)),       # z
            pl.BlockSpec((TB, 128), lambda i, k: (i, 0)),      # KL partials
        )
        scratch = [pltpu.VMEM((TB, 2 * Hp), jnp.float32)]
        dims = ("parallel", "arbitrary")

    # Explicit VMEM bound (keeps big configs generation-safe, incl. v7x 64 MiB).
    z_itemsize = jnp.dtype(x.dtype).itemsize
    acc_bytes = TB * 2 * Hp * 4
    live = 2 * (TK * 2 * Hp * w_itemsize          # weight block (double-buffered)
                + TB * TK * w_itemsize            # x block
                + TB * Hp * 4                     # eps block
                + TB * Hp * z_itemsize            # z block
                + TB * 128 * 4                    # KL block
                + 2 * Hp * 4) + acc_bytes         # bias + accumulator
    vmem_limit = int(min(max(2 * live, 32 << 20), 112 << 20))

    z_p, kl_p = pl.pallas_call(
        kernel,
        out_shape=(
            jax.ShapeDtypeStruct((Bp, Hp), x.dtype),           # z
            jax.ShapeDtypeStruct((Bp, 128), jnp.float32),      # KL partials
        ),
        grid=grid,
        in_specs=in_specs,
        out_specs=out_specs,
        scratch_shapes=scratch,
        compiler_params=pltpu.CompilerParams(
            dimension_semantics=dims,
            vmem_limit_bytes=vmem_limit),
    )(x_p, w_fused, b_fused, eps_p)

    z = z_p[:B, :H]
    kl_rows = -0.5 * jnp.sum(kl_p[:B], axis=1)   # finish lane reduction here
    loss = jnp.mean(kl_rows)
    return z, loss


def _init_linear(key, hidden_size):
    """Deterministic PyTorch-style Linear init: U(-1/sqrt(H), 1/sqrt(H))."""
    kw, kb = jax.random.split(key)
    bound = 1.0 / (hidden_size ** 0.5)
    # PyTorch weight is (out, in); we store it transposed as (in, out).
    w = jax.random.uniform(kw, (hidden_size, hidden_size), jnp.float32,
                           minval=-bound, maxval=bound)
    b = jax.random.uniform(kb, (hidden_size,), jnp.float32,
                           minval=-bound, maxval=bound)
    return w, b


if __name__ == "__main__":
    hidden_size = 32
    batch = 8

    root = jax.random.PRNGKey(0)
    k_x, k_mean, k_logvar, k_eps = jax.random.split(root, 4)

    x = jax.random.normal(k_x, (batch, hidden_size), dtype=jnp.float32)
    wm, bm = _init_linear(k_mean, hidden_size)
    wv, bv = _init_linear(k_logvar, hidden_size)
    eps = jax.random.normal(k_eps, (batch, hidden_size), dtype=jnp.float32)

    # Hoisted one-time parameter fuse/pad/cast (not in the per-call path).
    w_fused, b_fused = fuse_params(wm, bm, wv, bv)

    fwd = jax.jit(variational_sampler)
    z, loss = fwd(x, w_fused, b_fused, eps)
    jax.block_until_ready((z, loss))

    # Pure-JAX reference with the same bf16 MXU inputs / f32 accumulation.
    bf16 = jnp.bfloat16
    mean_ref = jnp.dot(x.astype(bf16), wm.astype(bf16),
                       preferred_element_type=jnp.float32) + bm
    logvar_ref = jnp.dot(x.astype(bf16), wv.astype(bf16),
                         preferred_element_type=jnp.float32) + bv
    z_ref = mean_ref + eps * jnp.exp(0.5 * logvar_ref)
    loss_ref = jnp.mean(-0.5 * jnp.sum(
        1.0 + logvar_ref - mean_ref ** 2 - jnp.exp(logvar_ref), axis=1))

    assert z.shape == (batch, hidden_size)
    assert jnp.allclose(z, z_ref, atol=1e-3, rtol=1e-3)
    assert jnp.allclose(loss, loss_ref, atol=1e-3, rtol=1e-3)

    print("KERNEL_OK")
</pallas_src>

<mosaic_0001>
module attributes {stable_mosaic.version = 11 : i64} {
  func.func @_vs_kernel_resident(%arg0: i32, %arg1: memref<8x128xbf16, #tpu.memory_space<vmem>>, %arg2: memref<128x256xbf16, #tpu.memory_space<vmem>>, %arg3: memref<1x256xf32, #tpu.memory_space<vmem>>, %arg4: memref<8x128xf32, #tpu.memory_space<vmem>>, %arg5: memref<8x128xf32, #tpu.memory_space<vmem>>, %arg6: memref<8x128xf32, #tpu.memory_space<vmem>>) attributes {dimension_semantics = [#tpu.dimension_semantics<parallel>], iteration_bounds = array<i64: 1>, scalar_prefetch = 0 : i64, scratch_operands = 0 : i64, tpu.core_type = #tpu.core_type<tc>, window_params = [{transform_indices = @transform_0, window_bounds = array<i64: 8, 128>}, {pipeline_mode = #tpu.pipeline_mode<synchronous>, transform_indices = @transform_1, window_bounds = array<i64: 128, 256>}, {pipeline_mode = #tpu.pipeline_mode<synchronous>, transform_indices = @transform_2, window_bounds = array<i64: 1, 256>}, {transform_indices = @transform_3, window_bounds = array<i64: 8, 128>}, {transform_indices = @transform_4, window_bounds = array<i64: 8, 128>}, {transform_indices = @transform_5, window_bounds = array<i64: 8, 128>}]} {
    %c0 = arith.constant 0 : index
    %c0_0 = arith.constant 0 : index
    %0 = vector.load %arg1[%c0, %c0_0] : memref<8x128xbf16, #tpu.memory_space<vmem>>, vector<8x128xbf16>
    %c0_1 = arith.constant 0 : index
    %c0_2 = arith.constant 0 : index
    %1 = vector.load %arg2[%c0_1, %c0_2] : memref<128x256xbf16, #tpu.memory_space<vmem>>, vector<128x256xbf16>
    %cst = arith.constant dense<0.000000e+00> : vector<8x256xf32>
    %2 = tpu.matmul %0, %1, %cst {dimension_numbers = #tpu.dot_dimension_numbers<[1], [0], [0], [1], [0, 0, 1, 1], [], []>} : vector<8x128xbf16>, vector<128x256xbf16>, vector<8x256xf32> -> vector<8x256xf32>
    %cst_3 = arith.constant 0.000000e+00 : f32
    %3 = vector.broadcast %cst_3 : f32 to vector<8x128xf32>
    %4 = vector.extract_strided_slice %2 {offsets = [0, 0], sizes = [8, 128], strides = [1, 1]} : vector<8x256xf32> to vector<8x128xf32>
    %c0_4 = arith.constant 0 : index
    %c0_5 = arith.constant 0 : index
    %5 = vector.load %arg3[%c0_4, %c0_5] : memref<1x256xf32, #tpu.memory_space<vmem>>, vector<1x128xf32>
    %6 = vector.broadcast %5 : vector<1x128xf32> to vector<8x128xf32>
    %7 = arith.addf %4, %6 : vector<8x128xf32>
    %8 = vector.extract_strided_slice %2 {offsets = [0, 128], sizes = [8, 128], strides = [1, 1]} : vector<8x256xf32> to vector<8x128xf32>
    %c0_6 = arith.constant 0 : index
    %c128 = arith.constant 128 : index
    %9 = vector.load %arg3[%c0_6, %c128] : memref<1x256xf32, #tpu.memory_space<vmem>>, vector<1x128xf32>
    %10 = vector.broadcast %9 : vector<1x128xf32> to vector<8x128xf32>
    %11 = arith.addf %8, %10 : vector<8x128xf32>
    %cst_7 = arith.constant 5.000000e-01 : f32
    %12 = vector.broadcast %cst_7 : f32 to vector<8x128xf32>
    %13 = arith.mulf %12, %11 : vector<8x128xf32>
    %14 = math.exp %13 : vector<8x128xf32>
    %c0_8 = arith.constant 0 : index
    %c0_9 = arith.constant 0 : index
    %15 = vector.load %arg4[%c0_8, %c0_9] : memref<8x128xf32, #tpu.memory_space<vmem>>, vector<8x128xf32>
    %16 = arith.mulf %15, %14 : vector<8x128xf32>
    %17 = arith.addf %7, %16 : vector<8x128xf32>
    %c0_10 = arith.constant 0 : index
    %c0_11 = arith.constant 0 : index
    %18 = vector.load %arg5[%c0_10, %c0_11] : memref<8x128xf32, #tpu.memory_space<vmem>>, vector<8x128xf32>
    tpu.vector_store %arg5[%c0_10, %c0_11], %17 {strides = array<i32>} : memref<8x128xf32, #tpu.memory_space<vmem>>, vector<8x128xf32>,
    %cst_12 = arith.constant 1.000000e+00 : f32
    %19 = vector.broadcast %cst_12 : f32 to vector<8x128xf32>
    %20 = arith.addf %19, %11 : vector<8x128xf32>
    %21 = arith.mulf %7, %7 : vector<8x128xf32>
    %22 = arith.subf %20, %21 : vector<8x128xf32>
    %23 = arith.mulf %14, %14 : vector<8x128xf32>
    %24 = arith.subf %22, %23 : vector<8x128xf32>
    %25 = arith.addf %3, %24 : vector<8x128xf32>
    %c0_13 = arith.constant 0 : index
    %c0_14 = arith.constant 0 : index
    %26 = vector.load %arg6[%c0_13, %c0_14] : memref<8x128xf32, #tpu.memory_space<vmem>>, vector<8x128xf32>
    tpu.vector_store %arg6[%c0_13, %c0_14], %25 {strides = array<i32>} : memref<8x128xf32, #tpu.memory_space<vmem>>, vector<8x128xf32>,
    return
  }
  func.func @transform_0(%arg0: i32) -> (i32, i32) {
    %c0_i32 = arith.constant 0 : i32
    %c0_i32_0 = arith.constant 0 : i32
    return %arg0, %c0_i32 : i32, i32
  }
  func.func @transform_1(%arg0: i32) -> (i32, i32) {
    %c0_i32 = arith.constant 0 : i32
    %c0_i32_0 = arith.constant 0 : i32
    %c0_i32_1 = arith.constant 0 : i32
    return %c0_i32, %c0_i32_0 : i32, i32
  }
  func.func @transform_2(%arg0: i32) -> (i32, i32) {
    %c0_i32 = arith.constant 0 : i32
    %c0_i32_0 = arith.constant 0 : i32
    %c0_i32_1 = arith.constant 0 : i32
    return %c0_i32, %c0_i32_0 : i32, i32
  }
  func.func @transform_3(%arg0: i32) -> (i32, i32) {
    %c0_i32 = arith.constant 0 : i32
    %c0_i32_0 = arith.constant 0 : i32
    return %arg0, %c0_i32 : i32, i32
  }
  func.func @transform_4(%arg0: i32) -> (i32, i32) {
    %c0_i32 = arith.constant 0 : i32
    %c0_i32_0 = arith.constant 0 : i32
    return %arg0, %c0_i32 : i32, i32
  }
  func.func @transform_5(%arg0: i32) -> (i32, i32) {
    %c0_i32 = arith.constant 0 : i32
    %c0_i32_0 = arith.constant 0 : i32
    return %arg0, %c0_i32 : i32, i32
  }
}

</mosaic_0001>

<llo_original>
// kernel: variational_sampler.1
$region0: #{variational_sampler.1}
  #allocation0 [shape = 'u32[]', space=smem, size = 0x4, offset = 0x4, fixed_abs, tag = 'smem constant byte address 0x4 - core index']
  #allocation1 [shape = 'u32[144,128]{1,0:T(1,128)}', space=vmem, size = 0x12000, scoped, tag = 'internal scratch']
  %s0 = inlined_call_operand.vmem [shape: bf16[8,128], index: 0, kind: input, shape index: {}]
  %s1 = inlined_call_operand.hbm [shape: bf16[128,256], index: 1, kind: input, shape index: {}]
  %s2 = inlined_call_operand.vmem [shape: f32[1,256], index: 2, kind: input, shape index: {}]
  %s3 = inlined_call_operand.vmem [shape: f32[8,128], index: 3, kind: input, shape index: {}]
  %s4 = inlined_call_operand.hbm [shape: f32[8,128], index: 4, kind: output, shape index: {0}]
  %s5 = inlined_call_operand.vmem [shape: f32[8,128], index: 5, kind: output, shape index: {1}]
  %6 = xla_tuple %s4, %s5
  %s7 = sld [smem:[#allocation0]]
  $region38: #{variational_sampler.1} parent=0
    _
  %s9 = ssub.s32 1, %s7
  %s10 = scalar_select 0, %s9, %s7
  $region1: #{variational_sampler.1} parent=0
    #allocation2 [shape = 'u8[65536]{0}', space=vmem, size = 0x10000, scoped, tag = 'input window, operand 1, single buffered']
    #allocation3 [shape = 's32[1]{0}', space=sflag, size = 0x4, scoped, tag = 'scoped memory for variational_sampler.1']
    #allocation4 [shape = 's32[1]{0}', space=sflag, size = 0x4, scoped, tag = 'scoped memory for variational_sampler.1']
    #allocation5 [shape = 'u8[4096]{0}', space=vmem, size = 0x1000, scoped, tag = 'output window, operand 0, single buffered']
    %11 = vsyncpa [#allocation3], 0
    %12 = vsyncpa [#allocation4], 0
    // Predicated region
    $region2: #{variational_sampler.1} parent=1 // pred_check
      _
    $region3: #{variational_sampler.1} parent=1 // pred_check_branch
      %14 = sbr.rel (0) target = $region5
    $region4: #{variational_sampler.1} parent=1 // pred_region
      _
    $region5: #{variational_sampler.1} parent=1 // pred_fallthru
      _
    // Predicated region
    $region6: #{variational_sampler.1} parent=1 // pred_check
      _
    $region7: #{variational_sampler.1} parent=1 // pred_check_branch
      %16 = sbr.rel (0) target = $region9
    $region8: #{variational_sampler.1} parent=1 // pred_region
      %s18 = ssub.s32 2048, 2048
      %19 = vsyncadd [#allocation3], %s18
      %s20 = sshll.u32 [#allocation2], 4
      %s21 = int_to_ptr.vmem [resolvable:$true] %s20
      %26 = dma.hbm_to_vmem [thread:$0]  %s1, 2048, %s21, [#allocation3], 128, 128, 8
    $region9: #{variational_sampler.1} parent=1 // pred_fallthru
      _
    // Predicated region
    $region10: #{variational_sampler.1} parent=1 // pred_check
      _
    $region11: #{variational_sampler.1} parent=1 // pred_check_branch
      %28 = sbr.rel (0) target = $region13
    $region12: #{variational_sampler.1} parent=1 // pred_region
      _
    $region13: #{variational_sampler.1} parent=1 // pred_fallthru
      _
    // Predicated region
    $region14: #{variational_sampler.1} parent=1 // pred_check
      _
    $region15: #{variational_sampler.1} parent=1 // pred_check_branch
      %30 = sbr.rel (0) target = $region17
    $region16: #{variational_sampler.1} parent=1 // pred_region
      _
    $region17: #{variational_sampler.1} parent=1 // pred_fallthru
      _
    // Predicated region
    $region18: #{variational_sampler.1} parent=1 // pred_check
      _
    $region19: #{variational_sampler.1} parent=1 // pred_check_branch
      %32 = sbr.rel (0) target = $region21
    $region20: #{variational_sampler.1} parent=1 // pred_region
      %33 = dma.done [#allocation3], 2048
    $region21: #{variational_sampler.1} parent=1 // pred_fallthru
      _
    %v35 = vld [vmem:[%s0] sm:$0xf]
    %v36 = vld [vmem:[#allocation2] sm:$0xff]
    %v37 = vld [vmem:[#allocation2 + $0x8] sm:$0xff]
    %v38 = vld [vmem:[#allocation2 + $0x10] sm:$0xff]
    %v39 = vld [vmem:[#allocation2 + $0x18] sm:$0xff]
    %v40 = vld [vmem:[#allocation2 + $0x20] sm:$0xff]
    %v41 = vld [vmem:[#allocation2 + $0x28] sm:$0xff]
    %v42 = vld [vmem:[#allocation2 + $0x30] sm:$0xff]
    %v43 = vld [vmem:[#allocation2 + $0x38] sm:$0xff]
    %v44 = vld [vmem:[#allocation2 + $0x40] sm:$0xff]
    %v45 = vld [vmem:[#allocation2 + $0x48] sm:$0xff]
    %v46 = vld [vmem:[#allocation2 + $0x50] sm:$0xff]
    %v47 = vld [vmem:[#allocation2 + $0x58] sm:$0xff]
    %v48 = vld [vmem:[#allocation2 + $0x60] sm:$0xff]
    %v49 = vld [vmem:[#allocation2 + $0x68] sm:$0xff]
    %v50 = vld [vmem:[#allocation2 + $0x70] sm:$0xff]
    %v51 = vld [vmem:[#allocation2 + $0x78] sm:$0xff]
    %v68 = vunpack.c.l.b16 %v36
    %v69 = vunpack.c.h.b16 %v36
    %v70 = vunpack.c.l.b16 %v37
    %v71 = vunpack.c.h.b16 %v37
    %v72 = vunpack.c.l.b16 %v38
    %v73 = vunpack.c.h.b16 %v38
    %v74 = vunpack.c.l.b16 %v39
    %v75 = vunpack.c.h.b16 %v39
    %v76 = vunpack.c.l.b16 %v40
    %v77 = vunpack.c.h.b16 %v40
    %v78 = vunpack.c.l.b16 %v41
    %v79 = vunpack.c.h.b16 %v41
    %v80 = vunpack.c.l.b16 %v42
    %v81 = vunpack.c.h.b16 %v42
    %v82 = vunpack.c.l.b16 %v43
    %v83 = vunpack.c.h.b16 %v43
    %v84 = vunpack.c.l.b16 %v44
    %v85 = vunpack.c.h.b16 %v44
    %v86 = vunpack.c.l.b16 %v45
    %v87 = vunpack.c.h.b16 %v45
    %v88 = vunpack.c.l.b16 %v46
    %v89 = vunpack.c.h.b16 %v46
    %v90 = vunpack.c.l.b16 %v47
    %v91 = vunpack.c.h.b16 %v47
    %v92 = vunpack.c.l.b16 %v48
    %v93 = vunpack.c.h.b16 %v48
    %v94 = vunpack.c.l.b16 %v49
    %v95 = vunpack.c.h.b16 %v49
    %v96 = vunpack.c.l.b16 %v50
    %v97 = vunpack.c.h.b16 %v50
    %v98 = vunpack.c.l.b16 %v51
    %v99 = vunpack.c.h.b16 %v51
    %v100 = vpack.c.b16 %v70, %v68
    %v101 = vpack.c.b16 %v71, %v69
    %v102 = vpack.c.b16 %v74, %v72
    %v103 = vpack.c.b16 %v75, %v73
    %v104 = vpack.c.b16 %v78, %v76
    %v105 = vpack.c.b16 %v79, %v77
    %v106 = vpack.c.b16 %v82, %v80
    %v107 = vpack.c.b16 %v83, %v81
    %v108 = vpack.c.b16 %v86, %v84
    %v109 = vpack.c.b16 %v87, %v85
    %v110 = vpack.c.b16 %v90, %v88
    %v111 = vpack.c.b16 %v91, %v89
    %v112 = vpack.c.b16 %v94, %v92
    %v113 = vpack.c.b16 %v95, %v93
    %v114 = vpack.c.b16 %v98, %v96
    %v115 = vpack.c.b16 %v99, %v97
    %132 = vmatprep.subr.bf16.mxu0 %v115
    %133 = vmatpush1.bf16.msra.mxu0 %v114
    %134 = vmatprep.subr.bf16.mxu0 %v113
    %135 = vmatpush1.bf16.msra.mxu0 %v112
    %136 = vmatprep.subr.bf16.mxu0 %v111
    %137 = vmatpush1.bf16.msra.mxu0 %v110
    %138 = vmatprep.subr.bf16.mxu0 %v109
    %139 = vmatpush1.bf16.msra.mxu0 %v108
    %140 = vmatprep.subr.bf16.mxu0 %v107
    %141 = vmatpush1.bf16.msra.mxu0 %v106
    %142 = vmatprep.subr.bf16.mxu0 %v105
    %143 = vmatpush1.bf16.msra.mxu0 %v104
    %144 = vmatprep.subr.bf16.mxu0 %v103
    %145 = vmatpush1.bf16.msra.mxu0 %v102
    %146 = vmatprep.subr.bf16.mxu0 %v101
    %147 = vmatpush1.bf16.msra.mxu0 %v100
    %148 = vmatprep.subr.bf16.mxu0 0
    %149 = vmatpush2.bf16.msra.mxu0 0
    %150 = vmatprep.subr.bf16.mxu0 0
    %151 = vmatpush2.bf16.msra.mxu0 0
    %152 = vmatprep.subr.bf16.mxu0 0
    %153 = vmatpush2.bf16.msra.mxu0 0
    %154 = vmatprep.subr.bf16.mxu0 0
    %155 = vmatpush2.bf16.msra.mxu0 0
    %156 = vmatprep.subr.bf16.mxu0 0
    %157 = vmatpush2.bf16.msra.mxu0 0
    %158 = vmatprep.subr.bf16.mxu0 0
    %159 = vmatpush2.bf16.msra.mxu0 0
    %160 = vmatprep.subr.bf16.mxu0 0
    %161 = vmatpush2.bf16.msra.mxu0 0
    %162 = vmatprep.subr.bf16.mxu0 0
    %163 = vmatpush2.bf16.msra.mxu0 0
    %164 = vmatprep.mubr.bf16.mxu0 0
    %165 = vmatmul.mubr.bf16.gmra.mxu0 %v35
    %v166 = vpop.f32.mrf.mxu0
    %v167 = vadd.f32 0.0, %v166
    %v168 = vpop.f32.mrf.mxu0
    %v169 = vadd.f32 0.0, %v168
    %v170 = vpop.f32.mrf.mxu0
    %v171 = vpop.f32.mrf.mxu0
    %172 = vdwg.mxu0
    %v173 = vld [vmem:[%s2] sm:$0x1]
    %v175 = vlaneseq
    %v176 = vshrl.u32 %v175, 7
    %v177 = vsub.s32 0, %v176
    %v178 = vrot.slane %v173, %v177
    %v180 = vadd.f32 %v167, %v178
    %v181 = vld [vmem:[%s2 + $0x1] sm:$0x1]
    %v183 = vlaneseq
    %v184 = vshrl.u32 %v183, 7
    %v185 = vsub.s32 0, %v184
    %v186 = vrot.slane %v181, %v185
    %v188 = vadd.f32 %v169, %v186
    %v189 = vmul.f32 %v188, 0.5
    %v190 = vmul.f32 %v189, 1.442695
    %v191 = vpow.pop %v190
    %v192 = vld [vmem:[%s3] sm:$0xff]
    %v193 = vmul.f32 %v192, %v191
    %v194 = vadd.f32 %v180, %v193
    %195 = vst [vmem:[#allocation5] sm:$0xff] %v194
    %v196 = vadd.f32 %v188, 1.0
    %v197 = vmul.f32 %v180, %v180
    %v198 = vsub.f32 %v196, %v197
    %v199 = vmul.f32 %v191, %v191
    %v200 = vsub.f32 %v198, %v199
    %v201 = vadd.f32 %v200, 0.0
    %202 = vst [vmem:[%s5] sm:$0xff] %v201
    // Predicated region
    $region22: #{variational_sampler.1} parent=1 // pred_check
      _
    $region23: #{variational_sampler.1} parent=1 // pred_check_branch
      %204 = sbr.rel (0) target = $region25
    $region24: #{variational_sampler.1} parent=1 // pred_region
      %s206 = ssub.s32 128, 128
      %207 = vsyncadd [#allocation4], %s206
      %s209 = sshll.u32 [#allocation5], 4
      %s210 = int_to_ptr.vmem [resolvable:$true] %s209
      %212 = dma.vmem_to_hbm [thread:$0]  %s210, 128, %s4, [#allocation4]
    $region25: #{variational_sampler.1} parent=1 // pred_fallthru
      _
    // Predicated region
    $region26: #{variational_sampler.1} parent=1 // pred_check
      _
    $region27: #{variational_sampler.1} parent=1 // pred_check_branch
      %214 = sbr.rel (0) target = $region29
    $region28: #{variational_sampler.1} parent=1 // pred_region
      _
    $region29: #{variational_sampler.1} parent=1 // pred_fallthru
      _
    // Predicated region
    $region30: #{variational_sampler.1} parent=1 // pred_check
      _
    $region31: #{variational_sampler.1} parent=1 // pred_check_branch
      %216 = sbr.rel (0) target = $region33
    $region32: #{variational_sampler.1} parent=1 // pred_region
      %217 = dma.done [#allocation4], 128
    $region33: #{variational_sampler.1} parent=1 // pred_fallthru
      _
    // Predicated region
    $region34: #{variational_sampler.1} parent=1 // pred_check
      _
    $region35: #{variational_sampler.1} parent=1 // pred_check_branch
      %219 = sbr.rel (0) target = $region37
    $region36: #{variational_sampler.1} parent=1 // pred_region
      _
    $region37: #{variational_sampler.1} parent=1 // pred_fallthru
      _
    %220 = vsyncpa [#allocation3], 1
    %221 = vsyncpa [#allocation4], 1

</llo_original>
